<compile_context>
chip_gen: v5e
topology: v5e:2x2
jax: 0.10.0
libtpu: 0.0.40
codegen_flags: <defaults>
</compile_context>

<pallas_src>
from functools import partial

import jax
import jax.numpy as jnp
from jax.experimental import pallas as pl
from jax.experimental.pallas import tpu as pltpu


def _round_up(a, b):
    return (a + b - 1) // b * b


# ----------------------------- router kernel --------------------------------
def router_kernel(x_ref, wr_ref, br_ref,
                  route_ref, pmax_ref, counts_ref, psum_ref,
                  *, n_valid, tm):
    t = pl.program_id(0)

    @pl.when(t == 0)
    def _():
        counts_ref[...] = jnp.zeros_like(counts_ref)
        psum_ref[...] = jnp.zeros_like(psum_ref)

    x = x_ref[...]                                                    # [TM, D] f32
    # Router matmul kept in f32: the argmax / first-index tie-break must match the
    # reference (bf16 could flip near-ties).  It is tiny (K=D, N=128 lanes).
    logits = jnp.dot(x, wr_ref[...], preferred_element_type=jnp.float32) + br_ref[...]
    m = jnp.max(logits, axis=-1, keepdims=True)
    ex = jnp.exp(logits - m)              # padded expert lanes carry logit -1e30 -> prob 0
    prob = ex / jnp.sum(ex, axis=-1, keepdims=True)                   # [TM, EP]
    pmax = jnp.max(prob, axis=-1, keepdims=True)                      # [TM, 1]
    lane = jax.lax.broadcasted_iota(jnp.int32, prob.shape, 1)
    # argmax with first-index tie-breaking (matches torch.max(dim=-1))
    route = jnp.min(jnp.where(prob == pmax, lane, prob.shape[-1]),
                    axis=-1, keepdims=True).astype(jnp.int32)         # [TM, 1]

    route_ref[...] = route
    pmax_ref[...] = pmax

    # Mask rows that are padding of the token dimension before reducing.
    row = t * tm + jax.lax.broadcasted_iota(jnp.int32, (tm, 1), 0)
    valid = (row < n_valid).astype(jnp.float32)                       # [TM, 1]
    onehot = (route == lane).astype(jnp.float32)                      # [TM, EP]
    counts_ref[...] += jnp.sum(onehot * valid, axis=0, keepdims=True)
    psum_ref[...] += jnp.sum(prob * valid, axis=0, keepdims=True)


def run_router(x_pad, wr_p, br_p, *, n_valid, tm):
    nt, d = x_pad.shape
    ep = wr_p.shape[1]
    out_shapes = (
        jax.ShapeDtypeStruct((nt, 1), jnp.int32),     # routes
        jax.ShapeDtypeStruct((nt, 1), jnp.float32),   # route_prob_max
        jax.ShapeDtypeStruct((1, ep), jnp.float32),   # counts (lane padded)
        jax.ShapeDtypeStruct((1, ep), jnp.float32),   # route_prob.sum(0) (lane padded)
    )
    return pl.pallas_call(
        partial(router_kernel, n_valid=n_valid, tm=tm),
        out_shape=out_shapes,
        grid=(nt // tm,),
        in_specs=[pl.BlockSpec((tm, d), lambda t: (t, 0)),
                  pl.BlockSpec((d, ep), lambda t: (0, 0)),
                  pl.BlockSpec((1, ep), lambda t: (0, 0))],
        out_specs=(pl.BlockSpec((tm, 1), lambda t: (t, 0)),
                   pl.BlockSpec((tm, 1), lambda t: (t, 0)),
                   pl.BlockSpec((1, ep), lambda t: (0, 0)),
                   pl.BlockSpec((1, ep), lambda t: (0, 0))),
        compiler_params=pltpu.CompilerParams(
            dimension_semantics=("arbitrary",),   # counts/psum accumulate over token tiles
            vmem_limit_bytes=48 * 1024 * 1024),
    )(x_pad, wr_p, br_p)


# ----------------------------- expert kernel --------------------------------
def expert_kernel(te_ref, x_ref, pmax_ref, w1_ref, b1_ref, w2_ref, b2_ref, out_ref,
                  *, scale_prob):
    # te_ref (scalar-prefetch tile->expert table) is consumed by the index_maps only.
    del te_ref
    f = pl.program_id(1)

    @pl.when(f == 0)
    def _():
        # Output block is resident across the d_ff axis -> use it directly as the
        # f32 accumulator (no extra VMEM scratch); seed it with the output bias.
        out_ref[...] = jnp.broadcast_to(b2_ref[...], out_ref.shape).astype(out_ref.dtype)

    # FFN chunk of this tile's expert: relu(x @ W1[:, f] + b1[f]) @ W2[f, :]
    h = jnp.dot(x_ref[...], w1_ref[...], preferred_element_type=jnp.float32)   # bf16 -> f32
    h = jnp.maximum(h + b1_ref[...], 0.0)
    out_ref[...] += jnp.dot(h.astype(w2_ref.dtype), w2_ref[...],
                            preferred_element_type=jnp.float32)

    @pl.when(f == pl.num_programs(1) - 1)
    def _():
        if scale_prob:
            out_ref[...] *= pmax_ref[...]


def run_experts(x_sorted, pmax_sorted, tile_expert, w1, b1, w2, b2,
                *, tm, t_ff, is_scale_prob=True):
    n_pad, d = x_sorted.shape
    e, _, f_dim = w1.shape
    n_tiles = n_pad // tm
    n_f = f_dim // t_ff

    grid_spec = pltpu.PrefetchScalarGridSpec(
        num_scalar_prefetch=1,
        grid=(n_tiles, n_f),
        in_specs=[
            pl.BlockSpec((tm, d), lambda t, f, te: (t, 0)),
            pl.BlockSpec((tm, 1), lambda t, f, te: (t, 0)),
            pl.BlockSpec((None, d, t_ff), lambda t, f, te: (te[t], 0, f)),
            pl.BlockSpec((None, 1, t_ff), lambda t, f, te: (te[t], 0, f)),
            pl.BlockSpec((None, t_ff, d), lambda t, f, te: (te[t], f, 0)),
            pl.BlockSpec((None, 1, d), lambda t, f, te: (te[t], 0, 0)),
        ],
        out_specs=pl.BlockSpec((tm, d), lambda t, f, te: (t, 0)),
    )
    return pl.pallas_call(
        partial(expert_kernel, scale_prob=is_scale_prob),
        out_shape=jax.ShapeDtypeStruct((n_pad, d), jnp.float32),
        grid_spec=grid_spec,
        compiler_params=pltpu.CompilerParams(
            dimension_semantics=("parallel", "arbitrary"),   # token tiles || , d_ff reduction
            vmem_limit_bytes=48 * 1024 * 1024),
    )(tile_expert, x_sorted, pmax_sorted, w1, b1, w2, b2)


# ------------------------------- wrapper -------------------------------------
def switch_feed_forward(x_sbd, params, *, is_scale_prob=True):
    """x_sbd: [seq_len, batch_size, d_model] (same axis convention as the PyTorch module)."""
    s, b, d = x_sbd.shape
    n = s * b
    e = params["w1"].shape[0]
    f_dim = params["w1"].shape[2]
    x = x_sbd.reshape(n, d)

    # ---- tile sizes ----
    tm = min(256, _round_up(n, 8))          # token tile (sublane multiple of 8)
    nt = _round_up(n, tm)                   # padded token count for the router
    t_ff = f_dim if f_dim <= 512 else 512   # d_ff tile (512 = multiple of 256 for real F)
    assert f_dim % t_ff == 0

    # ---- router (Pallas): lane-pad experts to 128 so logits/counts/psum stores are dense
    ep = _round_up(max(e, 128), 128)
    wr_p = jnp.zeros((d, ep), jnp.float32).at[:, :e].set(params["wr"])
    br_p = jnp.full((1, ep), -1e30, jnp.float32).at[:, :e].set(params["br"])
    x_pad = x if nt == n else jnp.concatenate(
        [x, jnp.zeros((nt - n, d), x.dtype)], axis=0)
    route_p, pmax_p, counts_p, psum_p = run_router(x_pad, wr_p, br_p, n_valid=n, tm=tm)
    routes = route_p[:n, 0]
    pmax = pmax_p[:n, 0]
    counts = jnp.round(counts_p[0, :e]).astype(jnp.int32)
    psum = psum_p[0, :e]

    # ---- group tokens by expert (top-1), pad each group to a multiple of tm so every
    #      token tile belongs to exactly ONE expert (static shapes; <= e extra tiles).
    sort_order = jnp.argsort(routes).astype(jnp.int32)       # token ids grouped by expert
    sorted_routes = routes[sort_order]
    pc = ((counts + tm - 1) // tm) * tm                      # padded group sizes
    gend_pad = jnp.cumsum(pc)
    gstart_pad = gend_pad - pc
    gstart = jnp.cumsum(counts) - counts
    n_pad = nt + e * tm                                      # static upper bound, multiple of tm
    pos = (gstart_pad[sorted_routes]
           + jnp.arange(n, dtype=jnp.int32) - gstart[sorted_routes])
    sorted_ids = jnp.full((n_pad,), n, jnp.int32).at[pos].set(sort_order)  # n = zero-row sentinel
    tile_start = jnp.arange(n_pad // tm, dtype=jnp.int32) * tm
    tile_expert = jnp.clip(jnp.searchsorted(gend_pad, tile_start, side="right"),
                           0, e - 1).astype(jnp.int32)

    # ---- gather tokens into expert order; bf16 to the MXU, f32 accumulation in-kernel
    x_aug = jnp.concatenate([x, jnp.zeros((1, d), x.dtype)], axis=0)
    pmax_aug = jnp.concatenate([pmax, jnp.zeros((1,), pmax.dtype)], axis=0)
    x_sorted = x_aug[sorted_ids].astype(jnp.bfloat16)
    pmax_sorted = pmax_aug[sorted_ids][:, None]

    out_sorted = run_experts(
        x_sorted, pmax_sorted, tile_expert,
        params["w1"].astype(jnp.bfloat16), params["b1"],
        params["w2"].astype(jnp.bfloat16), params["b2"],
        tm=tm, t_ff=t_ff, is_scale_prob=is_scale_prob)

    # ---- un-permute (each token appears exactly once in the sorted layout)
    token_pos = jnp.zeros((n,), jnp.int32).at[sort_order].set(pos)
    out = out_sorted[token_pos].astype(x.dtype)

    n_dropped = 0                                            # drop_tokens=False
    return out.reshape(s, b, d), counts, psum, n_dropped, pmax


# ---------------------------- pure-JAX reference ------------------------------
def reference(x_sbd, params, *, is_scale_prob=True):
    s, b, d = x_sbd.shape
    x = x_sbd.reshape(-1, d)
    logits = x @ params["wr"] + params["br"][0]
    prob = jax.nn.softmax(logits, axis=-1)
    pmax = prob.max(-1)
    routes = prob.argmax(-1)
    e = params["w1"].shape[0]
    ys = []
    for i in range(e):
        h = jnp.maximum(x @ params["w1"][i] + params["b1"][i, 0], 0.0)
        ys.append(h @ params["w2"][i] + params["b2"][i, 0])
    ys = jnp.stack(ys, 0)                                            # [E, N, D]
    final = ys[routes, jnp.arange(x.shape[0])]
    if is_scale_prob:
        final = final * pmax[:, None]
    counts = jnp.sum(jax.nn.one_hot(routes, e, dtype=jnp.float32), axis=0)
    return final.reshape(s, b, d), counts, prob.sum(0), pmax


if __name__ == "__main__":
    seq_len, batch, d_model, d_ff, n_experts = 8, 2, 32, 64, 4

    key = jax.random.PRNGKey(0)
    kx, kr, kb, k1, kb1, k2, kb2 = jax.random.split(key, 7)

    x = jax.random.normal(kx, (seq_len, batch, d_model), dtype=jnp.float32)
    params = {
        "wr": 0.1 * jax.random.normal(kr, (d_model, n_experts), dtype=jnp.float32),
        "br": 0.1 * jax.random.normal(kb, (1, n_experts), dtype=jnp.float32),
        "w1": 0.1 * jax.random.normal(k1, (n_experts, d_model, d_ff), dtype=jnp.float32),
        "b1": 0.1 * jax.random.normal(kb1, (n_experts, 1, d_ff), dtype=jnp.float32),
        "w2": 0.1 * jax.random.normal(k2, (n_experts, d_ff, d_model), dtype=jnp.float32),
        "b2": 0.1 * jax.random.normal(kb2, (n_experts, 1, d_model), dtype=jnp.float32),
    }

    out, counts, psum, n_dropped, pmax = switch_feed_forward(x, params, is_scale_prob=True)
    jax.block_until_ready(out)

    # sanity-check against a pure-JAX f32 reference (loose tolerance: expert FFN runs in bf16)
    ref_out, ref_counts, ref_psum, ref_pmax = reference(x, params, is_scale_prob=True)
    assert out.shape == (seq_len, batch, d_model)
    assert jnp.allclose(counts, ref_counts)
    assert jnp.allclose(psum, ref_psum, atol=1e-2, rtol=1e-2)
    assert jnp.allclose(pmax, ref_pmax, atol=1e-2, rtol=1e-2)
    assert jnp.allclose(out, ref_out, atol=3e-2, rtol=3e-2)
    assert n_dropped == 0

    print("KERNEL_OK")
</pallas_src>

<mosaic_0001>
module attributes {stable_mosaic.version = 11 : i64} {
  func.func @router_kernel(%arg0: i32, %arg1: memref<16x32xf32, #tpu.memory_space<vmem>>, %arg2: memref<32x128xf32, #tpu.memory_space<vmem>>, %arg3: memref<1x128xf32, #tpu.memory_space<vmem>>, %arg4: memref<16x1xi32, #tpu.memory_space<vmem>>, %arg5: memref<16x1xf32, #tpu.memory_space<vmem>>, %arg6: memref<1x128xf32, #tpu.memory_space<vmem>>, %arg7: memref<1x128xf32, #tpu.memory_space<vmem>>) attributes {dimension_semantics = [#tpu.dimension_semantics<arbitrary>], iteration_bounds = array<i64: 1>, scalar_prefetch = 0 : i64, scratch_operands = 0 : i64, tpu.core_type = #tpu.core_type<tc>, window_params = [{transform_indices = @transform_0, window_bounds = array<i64: 16, 32>}, {pipeline_mode = #tpu.pipeline_mode<synchronous>, transform_indices = @transform_1, window_bounds = array<i64: 32, 128>}, {pipeline_mode = #tpu.pipeline_mode<synchronous>, transform_indices = @transform_2, window_bounds = array<i64: 1, 128>}, {transform_indices = @transform_3, window_bounds = array<i64: 16, 1>}, {transform_indices = @transform_4, window_bounds = array<i64: 16, 1>}, {pipeline_mode = #tpu.pipeline_mode<synchronous>, transform_indices = @transform_5, window_bounds = array<i64: 1, 128>}, {pipeline_mode = #tpu.pipeline_mode<synchronous>, transform_indices = @transform_6, window_bounds = array<i64: 1, 128>}]} {
    %c0_i32 = arith.constant 0 : i32
    %0 = arith.cmpi eq, %arg0, %c0_i32 : i32
    %1 = arith.extui %0 : i1 to i32
    %c0_i32_0 = arith.constant 0 : i32
    %2 = arith.cmpi ne, %1, %c0_i32_0 : i32
    scf.if %2 {
      %cst_25 = arith.constant 0.000000e+00 : f32
      %55 = vector.broadcast %cst_25 : f32 to vector<1x128xf32>
      %c0_26 = arith.constant 0 : index
      %c0_27 = arith.constant 0 : index
      %56 = vector.load %arg6[%c0_26, %c0_27] : memref<1x128xf32, #tpu.memory_space<vmem>>, vector<1x128xf32>
      tpu.vector_store %arg6[%c0_26, %c0_27], %55 {strides = array<i32>} : memref<1x128xf32, #tpu.memory_space<vmem>>, vector<1x128xf32>,
      %cst_28 = arith.constant 0.000000e+00 : f32
      %57 = vector.broadcast %cst_28 : f32 to vector<1x128xf32>
      %c0_29 = arith.constant 0 : index
      %c0_30 = arith.constant 0 : index
      %58 = vector.load %arg7[%c0_29, %c0_30] : memref<1x128xf32, #tpu.memory_space<vmem>>, vector<1x128xf32>
      tpu.vector_store %arg7[%c0_29, %c0_30], %57 {strides = array<i32>} : memref<1x128xf32, #tpu.memory_space<vmem>>, vector<1x128xf32>,
    } else {
    }
    %c0 = arith.constant 0 : index
    %c0_1 = arith.constant 0 : index
    %3 = vector.load %arg1[%c0, %c0_1] : memref<16x32xf32, #tpu.memory_space<vmem>>, vector<16x32xf32>
    %c0_2 = arith.constant 0 : index
    %c0_3 = arith.constant 0 : index
    %4 = vector.load %arg2[%c0_2, %c0_3] : memref<32x128xf32, #tpu.memory_space<vmem>>, vector<32x128xf32>
    %cst = arith.constant dense<0.000000e+00> : vector<16x128xf32>
    %5 = tpu.matmul %3, %4, %cst {dimension_numbers = #tpu.dot_dimension_numbers<[1], [0], [0], [1], [0, 0, 1, 1], [], []>} : vector<16x32xf32>, vector<32x128xf32>, vector<16x128xf32> -> vector<16x128xf32>
    %c0_4 = arith.constant 0 : index
    %c0_5 = arith.constant 0 : index
    %6 = vector.load %arg3[%c0_4, %c0_5] : memref<1x128xf32, #tpu.memory_space<vmem>>, vector<1x128xf32>
    %7 = vector.broadcast %6 : vector<1x128xf32> to vector<16x128xf32>
    %8 = arith.addf %5, %7 : vector<16x128xf32>
    %cst_6 = arith.constant dense<0xFF800000> : vector<16xf32>
    %9 = vector.multi_reduction <maximumf>, %8, %cst_6 [1] : vector<16x128xf32> to vector<16xf32>
    %10 = vector.shape_cast %9 : vector<16xf32> to vector<16x1xf32>
    %11 = vector.broadcast %10 : vector<16x1xf32> to vector<16x128xf32>
    %12 = arith.subf %8, %11 : vector<16x128xf32>
    %13 = math.exp %12 : vector<16x128xf32>
    %cst_7 = arith.constant dense<0.000000e+00> : vector<16xf32>
    %14 = vector.multi_reduction <add>, %13, %cst_7 [1] : vector<16x128xf32> to vector<16xf32>
    %15 = vector.shape_cast %14 : vector<16xf32> to vector<16x1xf32>
    %16 = vector.broadcast %15 : vector<16x1xf32> to vector<16x128xf32>
    %17 = arith.divf %13, %16 : vector<16x128xf32>
    %cst_8 = arith.constant dense<0xFF800000> : vector<16xf32>
    %18 = vector.multi_reduction <maximumf>, %17, %cst_8 [1] : vector<16x128xf32> to vector<16xf32>
    %19 = vector.shape_cast %18 : vector<16xf32> to vector<16x1xf32>
    %20 = tpu.iota {dimensions = array<i32: 1>} : vector<16x128xi32>
    %21 = vector.broadcast %19 : vector<16x1xf32> to vector<16x128xf32>
    %22 = arith.cmpf oeq, %17, %21 : vector<16x128xf32>
    %c128_i32 = arith.constant 128 : i32
    %23 = vector.broadcast %c128_i32 : i32 to vector<16x128xi32>
    %24 = arith.select %22, %20, %23 : vector<16x128xi1>, vector<16x128xi32>
    %cst_9 = arith.constant dense<2147483647> : vector<16xi32>
    %25 = vector.multi_reduction <minsi>, %24, %cst_9 [1] : vector<16x128xi32> to vector<16xi32>
    %26 = vector.shape_cast %25 : vector<16xi32> to vector<16x1xi32>
    %c0_10 = arith.constant 0 : index
    %c0_11 = arith.constant 0 : index
    %27 = vector.load %arg4[%c0_10, %c0_11] : memref<16x1xi32, #tpu.memory_space<vmem>>, vector<16x1xi32>
    tpu.vector_store %arg4[%c0_10, %c0_11], %26 {strides = array<i32>} : memref<16x1xi32, #tpu.memory_space<vmem>>, vector<16x1xi32>,
    %c0_12 = arith.constant 0 : index
    %c0_13 = arith.constant 0 : index
    %28 = vector.load %arg5[%c0_12, %c0_13] : memref<16x1xf32, #tpu.memory_space<vmem>>, vector<16x1xf32>
    tpu.vector_store %arg5[%c0_12, %c0_13], %19 {strides = array<i32>} : memref<16x1xf32, #tpu.memory_space<vmem>>, vector<16x1xf32>,
    %c16_i32 = arith.constant 16 : i32
    %29 = arith.muli %arg0, %c16_i32 : i32
    %30 = tpu.iota {dimensions = array<i32: 0>} : vector<16x1xi32>
    %31 = vector.broadcast %29 : i32 to vector<16x1xi32>
    %32 = arith.addi %31, %30 : vector<16x1xi32>
    %c16_i32_14 = arith.constant 16 : i32
    %33 = vector.broadcast %c16_i32_14 : i32 to vector<16x1xi32>
    %34 = arith.cmpi slt, %32, %33 : vector<16x1xi32>
    %35 = arith.extui %34 : vector<16x1xi1> to vector<16x1xi32>
    %36 = arith.sitofp %35 : vector<16x1xi32> to vector<16x1xf32>
    %37 = vector.broadcast %26 : vector<16x1xi32> to vector<16x128xi32>
    %38 = arith.cmpi eq, %37, %20 : vector<16x128xi32>
    %39 = arith.extui %38 : vector<16x128xi1> to vector<16x128xi32>
    %40 = arith.sitofp %39 : vector<16x128xi32> to vector<16x128xf32>
    %c0_15 = arith.constant 0 : index
    %c0_16 = arith.constant 0 : index
    %41 = vector.load %arg6[%c0_15, %c0_16] : memref<1x128xf32, #tpu.memory_space<vmem>>, vector<1x128xf32>
    %42 = vector.broadcast %36 : vector<16x1xf32> to vector<16x128xf32>
    %43 = arith.mulf %40, %42 : vector<16x128xf32>
    %cst_17 = arith.constant dense<0.000000e+00> : vector<128xf32>
    %44 = vector.multi_reduction <add>, %43, %cst_17 [0] : vector<16x128xf32> to vector<128xf32>
    %45 = vector.shape_cast %44 : vector<128xf32> to vector<1x128xf32>
    %46 = arith.addf %41, %45 : vector<1x128xf32>
    %c0_18 = arith.constant 0 : index
    %c0_19 = arith.constant 0 : index
    %47 = vector.load %arg6[%c0_18, %c0_19] : memref<1x128xf32, #tpu.memory_space<vmem>>, vector<1x128xf32>
    tpu.vector_store %arg6[%c0_18, %c0_19], %46 {strides = array<i32>} : memref<1x128xf32, #tpu.memory_space<vmem>>, vector<1x128xf32>,
    %c0_20 = arith.constant 0 : index
    %c0_21 = arith.constant 0 : index
    %48 = vector.load %arg7[%c0_20, %c0_21] : memref<1x128xf32, #tpu.memory_space<vmem>>, vector<1x128xf32>
    %49 = vector.broadcast %36 : vector<16x1xf32> to vector<16x128xf32>
    %50 = arith.mulf %17, %49 : vector<16x128xf32>
    %cst_22 = arith.constant dense<0.000000e+00> : vector<128xf32>
    %51 = vector.multi_reduction <add>, %50, %cst_22 [0] : vector<16x128xf32> to vector<128xf32>
    %52 = vector.shape_cast %51 : vector<128xf32> to vector<1x128xf32>
    %53 = arith.addf %48, %52 : vector<1x128xf32>
    %c0_23 = arith.constant 0 : index
    %c0_24 = arith.constant 0 : index
    %54 = vector.load %arg7[%c0_23, %c0_24] : memref<1x128xf32, #tpu.memory_space<vmem>>, vector<1x128xf32>
    tpu.vector_store %arg7[%c0_23, %c0_24], %53 {strides = array<i32>} : memref<1x128xf32, #tpu.memory_space<vmem>>, vector<1x128xf32>,
    return
  }
  func.func @transform_0(%arg0: i32) -> (i32, i32) {
    %c0_i32 = arith.constant 0 : i32
    %c0_i32_0 = arith.constant 0 : i32
    return %arg0, %c0_i32 : i32, i32
  }
  func.func @transform_1(%arg0: i32) -> (i32, i32) {
    %c0_i32 = arith.constant 0 : i32
    %c0_i32_0 = arith.constant 0 : i32
    %c0_i32_1 = arith.constant 0 : i32
    return %c0_i32, %c0_i32_0 : i32, i32
  }
  func.func @transform_2(%arg0: i32) -> (i32, i32) {
    %c0_i32 = arith.constant 0 : i32
    %c0_i32_0 = arith.constant 0 : i32
    %c0_i32_1 = arith.constant 0 : i32
    return %c0_i32, %c0_i32_0 : i32, i32
  }
  func.func @transform_3(%arg0: i32) -> (i32, i32) {
    %c0_i32 = arith.constant 0 : i32
    %c0_i32_0 = arith.constant 0 : i32
    return %arg0, %c0_i32 : i32, i32
  }
  func.func @transform_4(%arg0: i32) -> (i32, i32) {
    %c0_i32 = arith.constant 0 : i32
    %c0_i32_0 = arith.constant 0 : i32
    return %arg0, %c0_i32 : i32, i32
  }
  func.func @transform_5(%arg0: i32) -> (i32, i32) {
    %c0_i32 = arith.constant 0 : i32
    %c0_i32_0 = arith.constant 0 : i32
    %c0_i32_1 = arith.constant 0 : i32
    return %c0_i32, %c0_i32_0 : i32, i32
  }
  func.func @transform_6(%arg0: i32) -> (i32, i32) {
    %c0_i32 = arith.constant 0 : i32
    %c0_i32_0 = arith.constant 0 : i32
    %c0_i32_1 = arith.constant 0 : i32
    return %c0_i32, %c0_i32_0 : i32, i32
  }
}

</mosaic_0001>

<llo_original>
// kernel: tpu_custom_call.1
$region0: #{tpu_custom_call.1}
  #allocation0 [shape = 'u32[]', space=smem, size = 0x4, offset = 0x4, fixed_abs, tag = 'smem constant byte address 0x4 - core index']
  #allocation1 [shape = 'u32[72,128]{1,0:T(1,128)}', space=vmem, size = 0x9000, scoped, tag = 'internal scratch']
  %s0 = inlined_call_operand.hbm [shape: f32[16,32], index: 0, kind: input, shape index: {}]
  %s1 = inlined_call_operand.hbm [shape: f32[32,128], index: 1, kind: input, shape index: {}]
  %s2 = inlined_call_operand.vmem [shape: f32[1,128], index: 2, kind: input, shape index: {}]
  %s3 = inlined_call_operand.vmem [shape: s32[16,1], index: 3, kind: output, shape index: {0}]
  %s4 = inlined_call_operand.vmem [shape: f32[16,1], index: 4, kind: output, shape index: {1}]
  %s5 = inlined_call_operand.hbm [shape: f32[1,128], index: 5, kind: output, shape index: {2}]
  %s6 = inlined_call_operand.hbm [shape: f32[1,128], index: 6, kind: output, shape index: {3}]
  %7 = xla_tuple %s3, %s4, %s5, %s6
  %s8 = sld [smem:[#allocation0]]
  $region58: #{tpu_custom_call.1} parent=0
    _
  %s10 = ssub.s32 1, %s8
  %s11 = scalar_select 0, %s10, %s8
  $region1: #{tpu_custom_call.1} parent=0
    #allocation2 [shape = 'u8[8192]{0}', space=vmem, size = 0x2000, scoped, tag = 'input window, operand 0, single buffered']
    #allocation3 [shape = 's32[1]{0}', space=sflag, size = 0x4, scoped, tag = 'scoped memory for tpu_custom_call.1']
    #allocation4 [shape = 's32[1]{0}', space=sflag, size = 0x4, scoped, tag = 'scoped memory for tpu_custom_call.1']
    #allocation5 [shape = 'u8[16384]{0}', space=vmem, size = 0x4000, scoped, tag = 'input window, operand 1, single buffered']
    #allocation6 [shape = 's32[1]{0}', space=sflag, size = 0x4, scoped, tag = 'scoped memory for tpu_custom_call.1']
    #allocation7 [shape = 'u8[512]{0}', space=vmem, size = 0x400, scoped, tag = 'output window, operand 2, single buffered']
    #allocation8 [shape = 'u8[512]{0}', space=vmem, size = 0x400, scoped, tag = 'output window, operand 3, single buffered']
    #allocation9 [shape = 's32[1]{0}', space=sflag, size = 0x4, scoped, tag = 'scoped memory for tpu_custom_call.1']
    %12 = vsyncpa [#allocation3], 0
    %13 = vsyncpa [#allocation6], 0
    %14 = vsyncpa [#allocation4], 0
    %15 = vsyncpa [#allocation9], 0
    // Predicated region
    $region2: #{tpu_custom_call.1} parent=1 // pred_check
      _
    $region3: #{tpu_custom_call.1} parent=1 // pred_check_branch
      %17 = sbr.rel (0) target = $region5
    $region4: #{tpu_custom_call.1} parent=1 // pred_region
      %19 = vsyncadd [#allocation3], 0
      %s20 = sshll.u32 %s0, 4
      %s21 = int_to_ptr.hbm [resolvable:$true] %s20
      %s22 = sshll.u32 [#allocation2], 4
      %s23 = int_to_ptr.vmem [resolvable:$true] %s22
      %28 = dma.hbm_to_vmem [thread:$0]  %s21, 256, %s23, [#allocation3], 128, 128, 8
    $region5: #{tpu_custom_call.1} parent=1 // pred_fallthru
      _
    // Predicated region
    $region6: #{tpu_custom_call.1} parent=1 // pred_check
      _
    $region7: #{tpu_custom_call.1} parent=1 // pred_check_branch
      %30 = sbr.rel (0) target = $region9
    $region8: #{tpu_custom_call.1} parent=1 // pred_region
      %32 = vsyncadd [#allocation6], 0
      %s33 = sshll.u32 %s1, 4
      %s34 = int_to_ptr.hbm [resolvable:$true] %s33
      %s35 = sshll.u32 [#allocation5], 4
      %s36 = int_to_ptr.vmem [resolvable:$true] %s35
      %41 = dma.hbm_to_vmem [thread:$0]  %s34, 512, %s36, [#allocation6], 128, 128, 8
    $region9: #{tpu_custom_call.1} parent=1 // pred_fallthru
      _
    // Predicated region
    $region10: #{tpu_custom_call.1} parent=1 // pred_check
      _
    $region11: #{tpu_custom_call.1} parent=1 // pred_check_branch
      %43 = sbr.rel (0) target = $region13
    $region12: #{tpu_custom_call.1} parent=1 // pred_region
      _
    $region13: #{tpu_custom_call.1} parent=1 // pred_fallthru
      _
    // Predicated region
    $region14: #{tpu_custom_call.1} parent=1 // pred_check
      _
    $region15: #{tpu_custom_call.1} parent=1 // pred_check_branch
      %45 = sbr.rel (0) target = $region17
    $region16: #{tpu_custom_call.1} parent=1 // pred_region
      %47 = dma.done [#allocation3], 256
    $region17: #{tpu_custom_call.1} parent=1 // pred_fallthru
      _
    // Predicated region
    $region18: #{tpu_custom_call.1} parent=1 // pred_check
      _
    $region19: #{tpu_custom_call.1} parent=1 // pred_check_branch
      %49 = sbr.rel (0) target = $region21
    $region20: #{tpu_custom_call.1} parent=1 // pred_region
      %51 = dma.done [#allocation6], 512
    $region21: #{tpu_custom_call.1} parent=1 // pred_fallthru
      _
    %p52 = scmp.eq.s32.totalorder 0, 0
    // Predicated region
    $region22: #{tpu_custom_call.1} parent=1 // pred_check
      %p53 = pneg %p52
    $region23: #{tpu_custom_call.1} parent=1 // pred_check_branch
      %55 = sbr.rel (%p53) target = $region25
    $region24: #{tpu_custom_call.1} parent=1 // pred_region
      %56 = vst [vmem:[#allocation7] sm:$0x1] 0.0
      %57 = vst [vmem:[#allocation8] sm:$0x1] 0.0
    $region25: #{tpu_custom_call.1} parent=1 // pred_fallthru
      _
    %v58 = vld [vmem:[#allocation2] sm:$0xff]
    %v59 = vld [vmem:[#allocation2 + $0x8] sm:$0xff]
    %v60 = vld [vmem:[#allocation5] sm:$0xff]
    %v61 = vld [vmem:[#allocation5 + $0x8] sm:$0xff]
    %v62 = vld [vmem:[#allocation5 + $0x10] sm:$0xff]
    %v63 = vld [vmem:[#allocation5 + $0x18] sm:$0xff]
    %v64 = vld [vmem:[%s2] sm:$0x1]
    %v66 = vperm.slane %v64, 0
    %vm68 = vcmask 261120
    %v70 = vsel %vm68, %v58, 0
    %v73 = vsel %vm68, %v59, 0
    %75 = vmatpush.msra.mxu0 0.0
    %76 = vmatpush.msra.mxu0 0.0
    %77 = vmatpush.msra.mxu0 0.0
    %78 = vmatpush.msra.mxu0 0.0
    %79 = vmatpush.msra.mxu0 0.0
    %80 = vmatpush.msra.mxu0 0.0
    %81 = vmatpush.msra.mxu0 0.0
    %82 = vmatpush.msra.mxu0 0.0
    %83 = vmatpush.msra.mxu0 0.0
    %84 = vmatpush.msra.mxu0 0.0
    %85 = vmatpush.msra.mxu0 0.0
    %86 = vmatpush.msra.mxu0 0.0
    %87 = vmatpush.msra.mxu0 %v63
    %88 = vmatpush.msra.mxu0 %v62
    %89 = vmatpush.msra.mxu0 %v61
    %90 = vmatpush.msra.mxu0 %v60
    %91 = vmatmul.f32.gmra.mxu0 %v70
    %v92 = vpop.f32.mrf.mxu0
    %v93 = vadd.f32 %v66, %v92
    %94 = vmatmul.f32.gmra.mxu0 %v73
    %v95 = vpop.f32.mrf.mxu0
    %v96 = vadd.f32 %v66, %v95
    %97 = vdwg.mxu0
    %98 = vmax.xlane.f32.xlu0 %v93
    %v99 = vpop.xlane.xlu0 %98
    %100 = vmax.xlane.f32.xlu0 %v96
    %v101 = vpop.xlane.xlu0 %100
    %v102 = vsub.f32 %v93, %v99
    %v103 = vsub.f32 %v96, %v101
    %v104 = vmul.f32 %v102, 1.442695
    %v105 = vpow.pop %v104
    %v106 = vmul.f32 %v103, 1.442695
    %v107 = vpow.pop %v106
    %108 = vadd.xlane.f32.xlu0 %v105
    %v109 = vpop.xlane.xlu0 %108
    %110 = vadd.xlane.f32.xlu0 %v107
    %v111 = vpop.xlane.xlu0 %110
    %v112 = vrcp.pop %v109
    %v113 = vmul.f32 %v109, %v112
    %v114 = vsub.f32 1.0, %v113
    %v115 = vmul.f32 %v112, %v114
    %v116 = vadd.f32 %v112, %v115
    %vm117 = vweird.f32 %v109
    %vm118 = vweird.f32 %v112
    %vm119 = vmor %vm117, %vm118
    %v120 = vsel %vm119, %v112, %v116
    %v121 = vand.u32 2147483647, %v109
    %vm122 = vcmp.eq.f32.partialorder %v121, 8.507059e+37
    %v123 = vand.u32 %v109, 2147483648
    %v124 = vor.u32 1.1754944e-38, %v123
    %v125 = vsel %vm122, %v124, %v120
    %v126 = vmul.f32 %v105, %v125
    %v127 = vrcp.pop %v111
    %v128 = vmul.f32 %v111, %v127
    %v129 = vsub.f32 1.0, %v128
    %v130 = vmul.f32 %v127, %v129
    %v131 = vadd.f32 %v127, %v130
    %vm132 = vweird.f32 %v111
    %vm133 = vweird.f32 %v127
    %vm134 = vmor %vm132, %vm133
    %v135 = vsel %vm134, %v127, %v131
    %v136 = vand.u32 2147483647, %v111
    %vm137 = vcmp.eq.f32.partialorder %v136, 8.507059e+37
    %v138 = vand.u32 %v111, 2147483648
    %v139 = vor.u32 1.1754944e-38, %v138
    %v140 = vsel %vm137, %v139, %v135
    %v141 = vmul.f32 %v107, %v140
    %142 = vmax.xlane.f32.xlu0 %v126
    %v143 = vpop.xlane.xlu0 %142
    %144 = vmax.xlane.f32.xlu0 %v141
    %v145 = vpop.xlane.xlu0 %144
    %v146 = vlaneseq
    %v147 = vand.u32 %v146, 127
    %vm148 = vcmp.eq.f32.partialorder %v126, %v143
    %vm149 = vcmp.eq.f32.partialorder %v141, %v145
    %v150 = vsel %vm148, %v147, 128
    %v151 = vsel %vm149, %v147, 128
    %v152 = vand.u32 %v150, 65535
    %v153 = vshra.s32 %v150, 16
    %v154 = vcvt.s32.f32 %v152
    %v155 = vcvt.s32.f32 %v153
    %156 = vmin.xlane.f32.xlu0 %v155
    %v157 = vpop.xlane.xlu0 %156
    %vm158 = vcmp.eq.f32.partialorder %v155, %v157
    %v159 = vsel %vm158, %v154, inf
    %160 = vmin.xlane.f32.xlu0 %v159
    %v161 = vpop.xlane.xlu0 %160
    %v162 = vcvt.f32.s32 %v161
    %v163 = vcvt.f32.s32 %v157
    %v164 = vshll.u32 %v163, 16
    %v165 = vadd.s32 %v164, %v162
    %v166 = vand.u32 %v151, 65535
    %v167 = vshra.s32 %v151, 16
    %v168 = vcvt.s32.f32 %v166
    %v169 = vcvt.s32.f32 %v167
    %170 = vmin.xlane.f32.xlu0 %v169
    %v171 = vpop.xlane.xlu0 %170
    %vm172 = vcmp.eq.f32.partialorder %v169, %v171
    %v173 = vsel %vm172, %v168, inf
    %174 = vmin.xlane.f32.xlu0 %v173
    %v175 = vpop.xlane.xlu0 %174
    %v176 = vcvt.f32.s32 %v175
    %v177 = vcvt.f32.s32 %v171
    %v178 = vshll.u32 %v177, 16
    %v179 = vadd.s32 %v178, %v176
    %vm180 = vcmask 7168
    %181 = vst.msk [vmem:[%s3] sm:$0xff] %vm180, %v165
    %182 = vst.msk [vmem:[%s3 + $0x8] sm:$0xff] %vm180, %v179
    %183 = vst.msk [vmem:[%s4] sm:$0xff] %vm180, %v143
    %184 = vst.msk [vmem:[%s4 + $0x8] sm:$0xff] %vm180, %v145
    %s185 = smul.u32 0, 16
    %v186 = vlaneseq
    %v187 = vshrl.u32 %v186, 7
    %v188 = vadd.s32 %v187, 8
    %v189 = vstv %s185
    %v190 = vadd.s32 %v189, %v187
    %v191 = vadd.s32 %v189, %v188
    %vm192 = vcmp.lt.s32.totalorder %v190, 16
    %vm193 = vcmp.lt.s32.totalorder %v191, 16
    %v194 = vsel %vm192, 1, 0
    %v195 = vsel %vm193, 1, 0
    %v196 = vcvt.s32.f32 %v194
    %v197 = vcvt.s32.f32 %v195
    %vm198 = vcmp.eq.s32.totalorder %v165, %v147
    %vm199 = vcmp.eq.s32.totalorder %v179, %v147
    %v200 = vsel %vm198, 1, 0
    %v201 = vsel %vm199, 1, 0
    %v202 = vcvt.s32.f32 %v200
    %v203 = vcvt.s32.f32 %v201
    %v204 = vld [vmem:[#allocation7] sm:$0x1]
    %v205 = vmul.f32 %v202, %v196
    %v206 = vmul.f32 %v203, %v197
    %v207 = vadd.f32 %v205, %v206
    %v208 = vrot.slane %v207, 4
    %v209 = vadd.f32 %v207, %v208
    %v210 = vrot.slane %v209, 2
    %v211 = vadd.f32 %v209, %v210
    %v212 = vrot.slane %v211, 1
    %v213 = vadd.f32 %v211, %v212
    %v214 = vadd.f32 %v204, %v213
    %215 = vst [vmem:[#allocation7] sm:$0x1] %v214
    %v216 = vld [vmem:[#allocation8] sm:$0x1]
    %v217 = vmul.f32 %v126, %v196
    %v218 = vmul.f32 %v141, %v197
    %v219 = vadd.f32 %v217, %v218
    %v220 = vrot.slane %v219, 4
    %v221 = vadd.f32 %v219, %v220
    %v222 = vrot.slane %v221, 2
    %v223 = vadd.f32 %v221, %v222
    %v224 = vrot.slane %v223, 1
    %v225 = vadd.f32 %v223, %v224
    %v226 = vadd.f32 %v216, %v225
    %227 = vst [vmem:[#allocation8] sm:$0x1] %v226
    // Predicated region
    $region26: #{tpu_custom_call.1} parent=1 // pred_check
      _
    $region27: #{tpu_custom_call.1} parent=1 // pred_check_branch
      %229 = sbr.rel (0) target = $region29
    $region28: #{tpu_custom_call.1} parent=1 // pred_region
      _
    $region29: #{tpu_custom_call.1} parent=1 // pred_fallthru
      _
    // Predicated region
    $region30: #{tpu_custom_call.1} parent=1 // pred_check
      _
    $region31: #{tpu_custom_call.1} parent=1 // pred_check_branch
      %231 = sbr.rel (0) target = $region33
    $region32: #{tpu_custom_call.1} parent=1 // pred_region
      _
    $region33: #{tpu_custom_call.1} parent=1 // pred_fallthru
      _
    // Predicated region
    $region34: #{tpu_custom_call.1} parent=1 // pred_check
      _
    $region35: #{tpu_custom_call.1} parent=1 // pred_check_branch
      %233 = sbr.rel (0) target = $region37
    $region36: #{tpu_custom_call.1} parent=1 // pred_region
      %235 = vsyncadd [#allocation4], 0
      %s237 = sshll.u32 [#allocation7], 4
      %s238 = int_to_ptr.vmem [resolvable:$true] %s237
      %s239 = sshll.u32 %s5, 4
      %s240 = int_to_ptr.hbm [resolvable:$true] %s239
      %242 = dma.vmem_to_hbm [thread:$0]  %s238, 16, %s240, [#allocation4]
    $region37: #{tpu_custom_call.1} parent=1 // pred_fallthru
      _
    // Predicated region
    $region38: #{tpu_custom_call.1} parent=1 // pred_check
      _
    $region39: #{tpu_custom_call.1} parent=1 // pred_check_branch
      %244 = sbr.rel (0) target = $region41
    $region40: #{tpu_custom_call.1} parent=1 // pred_region
      %246 = vsyncadd [#allocation9], 0
      %s248 = sshll.u32 [#allocation8], 4
      %s249 = int_to_ptr.vmem [resolvable:$true] %s248
      %s250 = sshll.u32 %s6, 4
      %s251 = int_to_ptr.hbm [resolvable:$true] %s250
      %253 = dma.vmem_to_hbm [thread:$0]  %s249, 16, %s251, [#allocation9]
    $region41: #{tpu_custom_call.1} parent=1 // pred_fallthru
      _
    // Predicated region
    $region42: #{tpu_custom_call.1} parent=1 // pred_check
      _
    $region43: #{tpu_custom_call.1} parent=1 // pred_check_branch
      %255 = sbr.rel (0) target = $region45
    $region44: #{tpu_custom_call.1} parent=1 // pred_region
      _
    $region45: #{tpu_custom_call.1} parent=1 // pred_fallthru
      _
    // Predicated region
    $region46: #{tpu_custom_call.1} parent=1 // pred_check
      _
    $region47: #{tpu_custom_call.1} parent=1 // pred_check_branch
      %257 = sbr.rel (0) target = $region49
    $region48: #{tpu_custom_call.1} parent=1 // pred_region
      _
    $region49: #{tpu_custom_call.1} parent=1 // pred_fallthru
      _
    // Predicated region
    $region50: #{tpu_custom_call.1} parent=1 // pred_check
      _
    $region51: #{tpu_custom_call.1} parent=1 // pred_check_branch
      %259 = sbr.rel (0) target = $region53
    $region52: #{tpu_custom_call.1} parent=1 // pred_region
      %261 = dma.done [#allocation4], 16
    $region53: #{tpu_custom_call.1} parent=1 // pred_fallthru
      _
    // Predicated region
    $region54: #{tpu_custom_call.1} parent=1 // pred_check
      _
    $region55: #{tpu_custom_call.1} parent=1 // pred_check_branch
      %263 = sbr.rel (0) target = $region57
    $region56: #{tpu_custom_call.1} parent=1 // pred_region
      %265 = dma.done [#allocation9], 16
    $region57: #{tpu_custom_call.1} parent=1 // pred_fallthru
      _
    %266 = vsyncpa [#allocation3], 1
    %267 = vsyncpa [#allocation6], 1
    %268 = vsyncpa [#allocation4], 1
    %269 = vsyncpa [#allocation9], 1

</llo_original>
